<compile_context>
chip_gen: v6e
topology: v6e:2x2x1
jax: 0.10.0
libtpu: 0.0.40
codegen_flags: <defaults>
</compile_context>

<pallas_src>
import jax
import jax.numpy as jnp
from jax import lax
from jax.experimental import pallas as pl
from jax.experimental.pallas import tpu as pltpu


def _make_kernel(mix_margin: int, groups_per_block: int):
    """Kernel over one (5*groups_per_block, H, W) channel block (batch squeezed)."""

    def _roll(v, shift, axis):
        # Compile-time, non-negative rotation amount; jnp.roll semantics:
        # out[j] = v[(j - shift) % size] along `axis`.
        if shift == 0:
            return v
        return pltpu.roll(v, shift, axis=axis)

    def kernel(x_ref, o_ref):
        H, W = x_ref.shape[-2], x_ref.shape[-1]
        m = mix_margin
        w_minus = (-m) % W   # roll -m along W  -> out[..., j] = x[..., (j+m) % W]
        w_plus = m % W       # roll +m along W  -> out[..., j] = x[..., (j-m) % W]
        h_minus = (-m) % H   # roll -m along H  -> out[i, ...] = x[(i+m) % H, ...]
        h_plus = m % H       # roll +m along H  -> out[i, ...] = x[(i-m) % H, ...]

        for g in range(groups_per_block):          # static unroll, pattern repeats mod 5
            c = 5 * g
            # Write each shifted channel straight into the output ref.
            o_ref[c + 0] = _roll(x_ref[c + 0], w_minus, axis=1)  # mask[0::5, 0, m, -1]
            o_ref[c + 1] = _roll(x_ref[c + 1], w_plus, axis=1)   # mask[1::5, 0, m,  0]
            o_ref[c + 2] = _roll(x_ref[c + 2], h_minus, axis=0)  # mask[2::5, 0,-1,  m]
            o_ref[c + 3] = _roll(x_ref[c + 3], h_plus, axis=0)   # mask[3::5, 0, 0,  m]
            o_ref[c + 4] = x_ref[c + 4]                          # mask[4::5, 0, m,  m]

    return kernel


def pixel_mixer(x, mix_margin: int = 1, *, max_block_bytes: int = 4 * 1024 * 1024):
    """Forward pass of PixelMixer(planes=C, mix_margin) on an NCHW input."""
    N, C, H, W = x.shape
    assert C % 5 == 0, "planes must be divisible by 5"
    n_groups = C // 5
    itemsize = jnp.dtype(x.dtype).itemsize

    # Pack as many channel groups per block as fit under the per-block budget
    # (budget chosen so 2 specs x 2 pipeline buffers stays well inside v7x's
    # 32 MiB scoped-VMEM default; v5e/v6e have headroom to spare).  H and W
    # stay full-extent so the circular wrap needs no halo DMA.
    group_bytes = 5 * H * W * itemsize
    g = n_groups
    while g > 1 and (g * group_bytes > max_block_bytes or n_groups % g != 0):
        g -= 1
    groups_per_block = g

    block = (None, 5 * groups_per_block, H, W)      # batch dim squeezed out
    index_map = lambda n, gb: (n, gb, 0, 0)
    grid = (N, n_groups // groups_per_block)        # two independent parallel axes

    kernel = _make_kernel(mix_margin, groups_per_block)
    bytes_accessed = 2 * N * C * H * W * itemsize   # read once + write once

    # TODO(synk): for realistic inputs with W not a multiple of 128, stores stay
    # lane-masked; physically padding W would break the circular wrap, so it is
    # left dense-as-is here.
    return pl.pallas_call(
        kernel,
        out_shape=jax.ShapeDtypeStruct((N, C, H, W), x.dtype),
        grid_spec=pl.GridSpec(
            grid=grid,
            in_specs=[pl.BlockSpec(block, index_map)],
            out_specs=pl.BlockSpec(block, index_map),
        ),
        compiler_params=pltpu.CompilerParams(
            dimension_semantics=("parallel", "parallel")),
        cost_estimate=pl.CostEstimate(
            flops=0, transcendentals=0, bytes_accessed=bytes_accessed),
    )(x)


def _reference(x, mix_margin: int = 1):
    """Faithful JAX port of the PyTorch forward (circular pad + depthwise conv)."""
    N, C, H, W = x.shape
    m = mix_margin
    k = 2 * m + 1
    mask = jnp.zeros((C, 1, k, k), x.dtype)
    mask = mask.at[3::5, 0, 0, m].set(1.0)
    mask = mask.at[2::5, 0, -1, m].set(1.0)
    mask = mask.at[1::5, 0, m, 0].set(1.0)
    mask = mask.at[0::5, 0, m, -1].set(1.0)
    mask = mask.at[4::5, 0, m, m].set(1.0)
    xp = jnp.pad(x, ((0, 0), (0, 0), (m, m), (m, m)), mode="wrap")
    return lax.conv_general_dilated(
        xp, mask, window_strides=(1, 1), padding="VALID",
        dimension_numbers=("NCHW", "OIHW", "NCHW"),
        feature_group_count=C)


if __name__ == "__main__":
    key = jax.random.PRNGKey(0)
    N, C, H, W = 2, 20, 16, 16  # planes=20 (divisible by 5), mix_margin=1
    x = jax.random.normal(key, (N, C, H, W), dtype=jnp.float32)

    out = jax.block_until_ready(pixel_mixer(x))

    ref = _reference(x)
    assert out.shape == ref.shape and out.dtype == ref.dtype
    assert jnp.allclose(out, ref, atol=1e-6), float(jnp.abs(out - ref).max())
    print("KERNEL_OK")
</pallas_src>

<mosaic_0001>
module attributes {stable_mosaic.version = 11 : i64} {
  func.func @kernel(%arg0: i32, %arg1: i32, %arg2: memref<1x20x16x16xf32, #tpu.memory_space<vmem>>, %arg3: memref<1x20x16x16xf32, #tpu.memory_space<vmem>>) attributes {dimension_semantics = [#tpu.dimension_semantics<parallel>, #tpu.dimension_semantics<parallel>], iteration_bounds = array<i64: 2, 1>, scalar_prefetch = 0 : i64, scratch_operands = 0 : i64, tpu.core_type = #tpu.core_type<tc>, window_params = [{transform_indices = @transform_0, window_bounds = array<i64: 1, 20, 16, 16>}, {transform_indices = @transform_1, window_bounds = array<i64: 1, 20, 16, 16>}]} {
    %c0 = arith.constant 0 : index
    %c0_0 = arith.constant 0 : index
    %c0_1 = arith.constant 0 : index
    %c0_2 = arith.constant 0 : index
    %0 = vector.load %arg2[%c0, %c0_0, %c0_1, %c0_2] : memref<1x20x16x16xf32, #tpu.memory_space<vmem>>, vector<1x1x16x16xf32>
    %1 = vector.shape_cast %0 : vector<1x1x16x16xf32> to vector<16x16xf32>
    %c15_i32 = arith.constant 15 : i32
    %2 = tpu.dynamic_rotate %1 by %c15_i32 dim 1 : vector<16x16xf32>, i32 -> vector<16x16xf32>
    %c0_3 = arith.constant 0 : index
    %c0_4 = arith.constant 0 : index
    %c0_5 = arith.constant 0 : index
    %c0_6 = arith.constant 0 : index
    %3 = vector.load %arg3[%c0_3, %c0_4, %c0_5, %c0_6] : memref<1x20x16x16xf32, #tpu.memory_space<vmem>>, vector<1x1x16x16xf32>
    %4 = vector.shape_cast %3 : vector<1x1x16x16xf32> to vector<16x16xf32>
    %5 = vector.shape_cast %2 : vector<16x16xf32> to vector<1x1x16x16xf32>
    tpu.vector_store %arg3[%c0_3, %c0_4, %c0_5, %c0_6], %5 {strides = array<i32>} : memref<1x20x16x16xf32, #tpu.memory_space<vmem>>, vector<1x1x16x16xf32>,
    %c0_7 = arith.constant 0 : index
    %c1 = arith.constant 1 : index
    %c0_8 = arith.constant 0 : index
    %c0_9 = arith.constant 0 : index
    %6 = vector.load %arg2[%c0_7, %c1, %c0_8, %c0_9] : memref<1x20x16x16xf32, #tpu.memory_space<vmem>>, vector<1x1x16x16xf32>
    %7 = vector.shape_cast %6 : vector<1x1x16x16xf32> to vector<16x16xf32>
    %c1_i32 = arith.constant 1 : i32
    %8 = tpu.dynamic_rotate %7 by %c1_i32 dim 1 : vector<16x16xf32>, i32 -> vector<16x16xf32>
    %c0_10 = arith.constant 0 : index
    %c1_11 = arith.constant 1 : index
    %c0_12 = arith.constant 0 : index
    %c0_13 = arith.constant 0 : index
    %9 = vector.load %arg3[%c0_10, %c1_11, %c0_12, %c0_13] : memref<1x20x16x16xf32, #tpu.memory_space<vmem>>, vector<1x1x16x16xf32>
    %10 = vector.shape_cast %9 : vector<1x1x16x16xf32> to vector<16x16xf32>
    %11 = vector.shape_cast %8 : vector<16x16xf32> to vector<1x1x16x16xf32>
    tpu.vector_store %arg3[%c0_10, %c1_11, %c0_12, %c0_13], %11 {strides = array<i32>} : memref<1x20x16x16xf32, #tpu.memory_space<vmem>>, vector<1x1x16x16xf32>,
    %c0_14 = arith.constant 0 : index
    %c2 = arith.constant 2 : index
    %c0_15 = arith.constant 0 : index
    %c0_16 = arith.constant 0 : index
    %12 = vector.load %arg2[%c0_14, %c2, %c0_15, %c0_16] : memref<1x20x16x16xf32, #tpu.memory_space<vmem>>, vector<1x1x16x16xf32>
    %13 = vector.shape_cast %12 : vector<1x1x16x16xf32> to vector<16x16xf32>
    %c15_i32_17 = arith.constant 15 : i32
    %14 = tpu.dynamic_rotate %13 by %c15_i32_17 dim 0 : vector<16x16xf32>, i32 -> vector<16x16xf32>
    %c0_18 = arith.constant 0 : index
    %c2_19 = arith.constant 2 : index
    %c0_20 = arith.constant 0 : index
    %c0_21 = arith.constant 0 : index
    %15 = vector.load %arg3[%c0_18, %c2_19, %c0_20, %c0_21] : memref<1x20x16x16xf32, #tpu.memory_space<vmem>>, vector<1x1x16x16xf32>
    %16 = vector.shape_cast %15 : vector<1x1x16x16xf32> to vector<16x16xf32>
    %17 = vector.shape_cast %14 : vector<16x16xf32> to vector<1x1x16x16xf32>
    tpu.vector_store %arg3[%c0_18, %c2_19, %c0_20, %c0_21], %17 {strides = array<i32>} : memref<1x20x16x16xf32, #tpu.memory_space<vmem>>, vector<1x1x16x16xf32>,
    %c0_22 = arith.constant 0 : index
    %c3 = arith.constant 3 : index
    %c0_23 = arith.constant 0 : index
    %c0_24 = arith.constant 0 : index
    %18 = vector.load %arg2[%c0_22, %c3, %c0_23, %c0_24] : memref<1x20x16x16xf32, #tpu.memory_space<vmem>>, vector<1x1x16x16xf32>
    %19 = vector.shape_cast %18 : vector<1x1x16x16xf32> to vector<16x16xf32>
    %c1_i32_25 = arith.constant 1 : i32
    %20 = tpu.dynamic_rotate %19 by %c1_i32_25 dim 0 : vector<16x16xf32>, i32 -> vector<16x16xf32>
    %c0_26 = arith.constant 0 : index
    %c3_27 = arith.constant 3 : index
    %c0_28 = arith.constant 0 : index
    %c0_29 = arith.constant 0 : index
    %21 = vector.load %arg3[%c0_26, %c3_27, %c0_28, %c0_29] : memref<1x20x16x16xf32, #tpu.memory_space<vmem>>, vector<1x1x16x16xf32>
    %22 = vector.shape_cast %21 : vector<1x1x16x16xf32> to vector<16x16xf32>
    %23 = vector.shape_cast %20 : vector<16x16xf32> to vector<1x1x16x16xf32>
    tpu.vector_store %arg3[%c0_26, %c3_27, %c0_28, %c0_29], %23 {strides = array<i32>} : memref<1x20x16x16xf32, #tpu.memory_space<vmem>>, vector<1x1x16x16xf32>,
    %c0_30 = arith.constant 0 : index
    %c4 = arith.constant 4 : index
    %c0_31 = arith.constant 0 : index
    %c0_32 = arith.constant 0 : index
    %24 = vector.load %arg2[%c0_30, %c4, %c0_31, %c0_32] : memref<1x20x16x16xf32, #tpu.memory_space<vmem>>, vector<1x1x16x16xf32>
    %25 = vector.shape_cast %24 : vector<1x1x16x16xf32> to vector<16x16xf32>
    %c0_33 = arith.constant 0 : index
    %c4_34 = arith.constant 4 : index
    %c0_35 = arith.constant 0 : index
    %c0_36 = arith.constant 0 : index
    %26 = vector.load %arg3[%c0_33, %c4_34, %c0_35, %c0_36] : memref<1x20x16x16xf32, #tpu.memory_space<vmem>>, vector<1x1x16x16xf32>
    %27 = vector.shape_cast %26 : vector<1x1x16x16xf32> to vector<16x16xf32>
    %28 = vector.shape_cast %25 : vector<16x16xf32> to vector<1x1x16x16xf32>
    tpu.vector_store %arg3[%c0_33, %c4_34, %c0_35, %c0_36], %28 {strides = array<i32>} : memref<1x20x16x16xf32, #tpu.memory_space<vmem>>, vector<1x1x16x16xf32>,
    %c0_37 = arith.constant 0 : index
    %c5 = arith.constant 5 : index
    %c0_38 = arith.constant 0 : index
    %c0_39 = arith.constant 0 : index
    %29 = vector.load %arg2[%c0_37, %c5, %c0_38, %c0_39] : memref<1x20x16x16xf32, #tpu.memory_space<vmem>>, vector<1x1x16x16xf32>
    %30 = vector.shape_cast %29 : vector<1x1x16x16xf32> to vector<16x16xf32>
    %c15_i32_40 = arith.constant 15 : i32
    %31 = tpu.dynamic_rotate %30 by %c15_i32_40 dim 1 : vector<16x16xf32>, i32 -> vector<16x16xf32>
    %c0_41 = arith.constant 0 : index
    %c5_42 = arith.constant 5 : index
    %c0_43 = arith.constant 0 : index
    %c0_44 = arith.constant 0 : index
    %32 = vector.load %arg3[%c0_41, %c5_42, %c0_43, %c0_44] : memref<1x20x16x16xf32, #tpu.memory_space<vmem>>, vector<1x1x16x16xf32>
    %33 = vector.shape_cast %32 : vector<1x1x16x16xf32> to vector<16x16xf32>
    %34 = vector.shape_cast %31 : vector<16x16xf32> to vector<1x1x16x16xf32>
    tpu.vector_store %arg3[%c0_41, %c5_42, %c0_43, %c0_44], %34 {strides = array<i32>} : memref<1x20x16x16xf32, #tpu.memory_space<vmem>>, vector<1x1x16x16xf32>,
    %c0_45 = arith.constant 0 : index
    %c6 = arith.constant 6 : index
    %c0_46 = arith.constant 0 : index
    %c0_47 = arith.constant 0 : index
    %35 = vector.load %arg2[%c0_45, %c6, %c0_46, %c0_47] : memref<1x20x16x16xf32, #tpu.memory_space<vmem>>, vector<1x1x16x16xf32>
    %36 = vector.shape_cast %35 : vector<1x1x16x16xf32> to vector<16x16xf32>
    %c1_i32_48 = arith.constant 1 : i32
    %37 = tpu.dynamic_rotate %36 by %c1_i32_48 dim 1 : vector<16x16xf32>, i32 -> vector<16x16xf32>
    %c0_49 = arith.constant 0 : index
    %c6_50 = arith.constant 6 : index
    %c0_51 = arith.constant 0 : index
    %c0_52 = arith.constant 0 : index
    %38 = vector.load %arg3[%c0_49, %c6_50, %c0_51, %c0_52] : memref<1x20x16x16xf32, #tpu.memory_space<vmem>>, vector<1x1x16x16xf32>
    %39 = vector.shape_cast %38 : vector<1x1x16x16xf32> to vector<16x16xf32>
    %40 = vector.shape_cast %37 : vector<16x16xf32> to vector<1x1x16x16xf32>
    tpu.vector_store %arg3[%c0_49, %c6_50, %c0_51, %c0_52], %40 {strides = array<i32>} : memref<1x20x16x16xf32, #tpu.memory_space<vmem>>, vector<1x1x16x16xf32>,
    %c0_53 = arith.constant 0 : index
    %c7 = arith.constant 7 : index
    %c0_54 = arith.constant 0 : index
    %c0_55 = arith.constant 0 : index
    %41 = vector.load %arg2[%c0_53, %c7, %c0_54, %c0_55] : memref<1x20x16x16xf32, #tpu.memory_space<vmem>>, vector<1x1x16x16xf32>
    %42 = vector.shape_cast %41 : vector<1x1x16x16xf32> to vector<16x16xf32>
    %c15_i32_56 = arith.constant 15 : i32
    %43 = tpu.dynamic_rotate %42 by %c15_i32_56 dim 0 : vector<16x16xf32>, i32 -> vector<16x16xf32>
    %c0_57 = arith.constant 0 : index
    %c7_58 = arith.constant 7 : index
    %c0_59 = arith.constant 0 : index
    %c0_60 = arith.constant 0 : index
    %44 = vector.load %arg3[%c0_57, %c7_58, %c0_59, %c0_60] : memref<1x20x16x16xf32, #tpu.memory_space<vmem>>, vector<1x1x16x16xf32>
    %45 = vector.shape_cast %44 : vector<1x1x16x16xf32> to vector<16x16xf32>
    %46 = vector.shape_cast %43 : vector<16x16xf32> to vector<1x1x16x16xf32>
    tpu.vector_store %arg3[%c0_57, %c7_58, %c0_59, %c0_60], %46 {strides = array<i32>} : memref<1x20x16x16xf32, #tpu.memory_space<vmem>>, vector<1x1x16x16xf32>,
    %c0_61 = arith.constant 0 : index
    %c8 = arith.constant 8 : index
    %c0_62 = arith.constant 0 : index
    %c0_63 = arith.constant 0 : index
    %47 = vector.load %arg2[%c0_61, %c8, %c0_62, %c0_63] : memref<1x20x16x16xf32, #tpu.memory_space<vmem>>, vector<1x1x16x16xf32>
    %48 = vector.shape_cast %47 : vector<1x1x16x16xf32> to vector<16x16xf32>
    %c1_i32_64 = arith.constant 1 : i32
    %49 = tpu.dynamic_rotate %48 by %c1_i32_64 dim 0 : vector<16x16xf32>, i32 -> vector<16x16xf32>
    %c0_65 = arith.constant 0 : index
    %c8_66 = arith.constant 8 : index
    %c0_67 = arith.constant 0 : index
    %c0_68 = arith.constant 0 : index
    %50 = vector.load %arg3[%c0_65, %c8_66, %c0_67, %c0_68] : memref<1x20x16x16xf32, #tpu.memory_space<vmem>>, vector<1x1x16x16xf32>
    %51 = vector.shape_cast %50 : vector<1x1x16x16xf32> to vector<16x16xf32>
    %52 = vector.shape_cast %49 : vector<16x16xf32> to vector<1x1x16x16xf32>
    tpu.vector_store %arg3[%c0_65, %c8_66, %c0_67, %c0_68], %52 {strides = array<i32>} : memref<1x20x16x16xf32, #tpu.memory_space<vmem>>, vector<1x1x16x16xf32>,
    %c0_69 = arith.constant 0 : index
    %c9 = arith.constant 9 : index
    %c0_70 = arith.constant 0 : index
    %c0_71 = arith.constant 0 : index
    %53 = vector.load %arg2[%c0_69, %c9, %c0_70, %c0_71] : memref<1x20x16x16xf32, #tpu.memory_space<vmem>>, vector<1x1x16x16xf32>
    %54 = vector.shape_cast %53 : vector<1x1x16x16xf32> to vector<16x16xf32>
    %c0_72 = arith.constant 0 : index
    %c9_73 = arith.constant 9 : index
    %c0_74 = arith.constant 0 : index
    %c0_75 = arith.constant 0 : index
    %55 = vector.load %arg3[%c0_72, %c9_73, %c0_74, %c0_75] : memref<1x20x16x16xf32, #tpu.memory_space<vmem>>, vector<1x1x16x16xf32>
    %56 = vector.shape_cast %55 : vector<1x1x16x16xf32> to vector<16x16xf32>
    %57 = vector.shape_cast %54 : vector<16x16xf32> to vector<1x1x16x16xf32>
    tpu.vector_store %arg3[%c0_72, %c9_73, %c0_74, %c0_75], %57 {strides = array<i32>} : memref<1x20x16x16xf32, #tpu.memory_space<vmem>>, vector<1x1x16x16xf32>,
    %c0_76 = arith.constant 0 : index
    %c10 = arith.constant 10 : index
    %c0_77 = arith.constant 0 : index
    %c0_78 = arith.constant 0 : index
    %58 = vector.load %arg2[%c0_76, %c10, %c0_77, %c0_78] : memref<1x20x16x16xf32, #tpu.memory_space<vmem>>, vector<1x1x16x16xf32>
    %59 = vector.shape_cast %58 : vector<1x1x16x16xf32> to vector<16x16xf32>
    %c15_i32_79 = arith.constant 15 : i32
    %60 = tpu.dynamic_rotate %59 by %c15_i32_79 dim 1 : vector<16x16xf32>, i32 -> vector<16x16xf32>
    %c0_80 = arith.constant 0 : index
    %c10_81 = arith.constant 10 : index
    %c0_82 = arith.constant 0 : index
    %c0_83 = arith.constant 0 : index
    %61 = vector.load %arg3[%c0_80, %c10_81, %c0_82, %c0_83] : memref<1x20x16x16xf32, #tpu.memory_space<vmem>>, vector<1x1x16x16xf32>
    %62 = vector.shape_cast %61 : vector<1x1x16x16xf32> to vector<16x16xf32>
    %63 = vector.shape_cast %60 : vector<16x16xf32> to vector<1x1x16x16xf32>
    tpu.vector_store %arg3[%c0_80, %c10_81, %c0_82, %c0_83], %63 {strides = array<i32>} : memref<1x20x16x16xf32, #tpu.memory_space<vmem>>, vector<1x1x16x16xf32>,
    %c0_84 = arith.constant 0 : index
    %c11 = arith.constant 11 : index
    %c0_85 = arith.constant 0 : index
    %c0_86 = arith.constant 0 : index
    %64 = vector.load %arg2[%c0_84, %c11, %c0_85, %c0_86] : memref<1x20x16x16xf32, #tpu.memory_space<vmem>>, vector<1x1x16x16xf32>
    %65 = vector.shape_cast %64 : vector<1x1x16x16xf32> to vector<16x16xf32>
    %c1_i32_87 = arith.constant 1 : i32
    %66 = tpu.dynamic_rotate %65 by %c1_i32_87 dim 1 : vector<16x16xf32>, i32 -> vector<16x16xf32>
    %c0_88 = arith.constant 0 : index
    %c11_89 = arith.constant 11 : index
    %c0_90 = arith.constant 0 : index
    %c0_91 = arith.constant 0 : index
    %67 = vector.load %arg3[%c0_88, %c11_89, %c0_90, %c0_91] : memref<1x20x16x16xf32, #tpu.memory_space<vmem>>, vector<1x1x16x16xf32>
    %68 = vector.shape_cast %67 : vector<1x1x16x16xf32> to vector<16x16xf32>
    %69 = vector.shape_cast %66 : vector<16x16xf32> to vector<1x1x16x16xf32>
    tpu.vector_store %arg3[%c0_88, %c11_89, %c0_90, %c0_91], %69 {strides = array<i32>} : memref<1x20x16x16xf32, #tpu.memory_space<vmem>>, vector<1x1x16x16xf32>,
    %c0_92 = arith.constant 0 : index
    %c12 = arith.constant 12 : index
    %c0_93 = arith.constant 0 : index
    %c0_94 = arith.constant 0 : index
    %70 = vector.load %arg2[%c0_92, %c12, %c0_93, %c0_94] : memref<1x20x16x16xf32, #tpu.memory_space<vmem>>, vector<1x1x16x16xf32>
    %71 = vector.shape_cast %70 : vector<1x1x16x16xf32> to vector<16x16xf32>
    %c15_i32_95 = arith.constant 15 : i32
    %72 = tpu.dynamic_rotate %71 by %c15_i32_95 dim 0 : vector<16x16xf32>, i32 -> vector<16x16xf32>
    %c0_96 = arith.constant 0 : index
    %c12_97 = arith.constant 12 : index
    %c0_98 = arith.constant 0 : index
    %c0_99 = arith.constant 0 : index
    %73 = vector.load %arg3[%c0_96, %c12_97, %c0_98, %c0_99] : memref<1x20x16x16xf32, #tpu.memory_space<vmem>>, vector<1x1x16x16xf32>
    %74 = vector.shape_cast %73 : vector<1x1x16x16xf32> to vector<16x16xf32>
    %75 = vector.shape_cast %72 : vector<16x16xf32> to vector<1x1x16x16xf32>
    tpu.vector_store %arg3[%c0_96, %c12_97, %c0_98, %c0_99], %75 {strides = array<i32>} : memref<1x20x16x16xf32, #tpu.memory_space<vmem>>, vector<1x1x16x16xf32>,
    %c0_100 = arith.constant 0 : index
    %c13 = arith.constant 13 : index
    %c0_101 = arith.constant 0 : index
    %c0_102 = arith.constant 0 : index
    %76 = vector.load %arg2[%c0_100, %c13, %c0_101, %c0_102] : memref<1x20x16x16xf32, #tpu.memory_space<vmem>>, vector<1x1x16x16xf32>
    %77 = vector.shape_cast %76 : vector<1x1x16x16xf32> to vector<16x16xf32>
    %c1_i32_103 = arith.constant 1 : i32
    %78 = tpu.dynamic_rotate %77 by %c1_i32_103 dim 0 : vector<16x16xf32>, i32 -> vector<16x16xf32>
    %c0_104 = arith.constant 0 : index
    %c13_105 = arith.constant 13 : index
    %c0_106 = arith.constant 0 : index
    %c0_107 = arith.constant 0 : index
    %79 = vector.load %arg3[%c0_104, %c13_105, %c0_106, %c0_107] : memref<1x20x16x16xf32, #tpu.memory_space<vmem>>, vector<1x1x16x16xf32>
    %80 = vector.shape_cast %79 : vector<1x1x16x16xf32> to vector<16x16xf32>
    %81 = vector.shape_cast %78 : vector<16x16xf32> to vector<1x1x16x16xf32>
    tpu.vector_store %arg3[%c0_104, %c13_105, %c0_106, %c0_107], %81 {strides = array<i32>} : memref<1x20x16x16xf32, #tpu.memory_space<vmem>>, vector<1x1x16x16xf32>,
    %c0_108 = arith.constant 0 : index
    %c14 = arith.constant 14 : index
    %c0_109 = arith.constant 0 : index
    %c0_110 = arith.constant 0 : index
    %82 = vector.load %arg2[%c0_108, %c14, %c0_109, %c0_110] : memref<1x20x16x16xf32, #tpu.memory_space<vmem>>, vector<1x1x16x16xf32>
    %83 = vector.shape_cast %82 : vector<1x1x16x16xf32> to vector<16x16xf32>
    %c0_111 = arith.constant 0 : index
    %c14_112 = arith.constant 14 : index
    %c0_113 = arith.constant 0 : index
    %c0_114 = arith.constant 0 : index
    %84 = vector.load %arg3[%c0_111, %c14_112, %c0_113, %c0_114] : memref<1x20x16x16xf32, #tpu.memory_space<vmem>>, vector<1x1x16x16xf32>
    %85 = vector.shape_cast %84 : vector<1x1x16x16xf32> to vector<16x16xf32>
    %86 = vector.shape_cast %83 : vector<16x16xf32> to vector<1x1x16x16xf32>
    tpu.vector_store %arg3[%c0_111, %c14_112, %c0_113, %c0_114], %86 {strides = array<i32>} : memref<1x20x16x16xf32, #tpu.memory_space<vmem>>, vector<1x1x16x16xf32>,
    %c0_115 = arith.constant 0 : index
    %c15 = arith.constant 15 : index
    %c0_116 = arith.constant 0 : index
    %c0_117 = arith.constant 0 : index
    %87 = vector.load %arg2[%c0_115, %c15, %c0_116, %c0_117] : memref<1x20x16x16xf32, #tpu.memory_space<vmem>>, vector<1x1x16x16xf32>
    %88 = vector.shape_cast %87 : vector<1x1x16x16xf32> to vector<16x16xf32>
    %c15_i32_118 = arith.constant 15 : i32
    %89 = tpu.dynamic_rotate %88 by %c15_i32_118 dim 1 : vector<16x16xf32>, i32 -> vector<16x16xf32>
    %c0_119 = arith.constant 0 : index
    %c15_120 = arith.constant 15 : index
    %c0_121 = arith.constant 0 : index
    %c0_122 = arith.constant 0 : index
    %90 = vector.load %arg3[%c0_119, %c15_120, %c0_121, %c0_122] : memref<1x20x16x16xf32, #tpu.memory_space<vmem>>, vector<1x1x16x16xf32>
    %91 = vector.shape_cast %90 : vector<1x1x16x16xf32> to vector<16x16xf32>
    %92 = vector.shape_cast %89 : vector<16x16xf32> to vector<1x1x16x16xf32>
    tpu.vector_store %arg3[%c0_119, %c15_120, %c0_121, %c0_122], %92 {strides = array<i32>} : memref<1x20x16x16xf32, #tpu.memory_space<vmem>>, vector<1x1x16x16xf32>,
    %c0_123 = arith.constant 0 : index
    %c16 = arith.constant 16 : index
    %c0_124 = arith.constant 0 : index
    %c0_125 = arith.constant 0 : index
    %93 = vector.load %arg2[%c0_123, %c16, %c0_124, %c0_125] : memref<1x20x16x16xf32, #tpu.memory_space<vmem>>, vector<1x1x16x16xf32>
    %94 = vector.shape_cast %93 : vector<1x1x16x16xf32> to vector<16x16xf32>
    %c1_i32_126 = arith.constant 1 : i32
    %95 = tpu.dynamic_rotate %94 by %c1_i32_126 dim 1 : vector<16x16xf32>, i32 -> vector<16x16xf32>
    %c0_127 = arith.constant 0 : index
    %c16_128 = arith.constant 16 : index
    %c0_129 = arith.constant 0 : index
    %c0_130 = arith.constant 0 : index
    %96 = vector.load %arg3[%c0_127, %c16_128, %c0_129, %c0_130] : memref<1x20x16x16xf32, #tpu.memory_space<vmem>>, vector<1x1x16x16xf32>
    %97 = vector.shape_cast %96 : vector<1x1x16x16xf32> to vector<16x16xf32>
    %98 = vector.shape_cast %95 : vector<16x16xf32> to vector<1x1x16x16xf32>
    tpu.vector_store %arg3[%c0_127, %c16_128, %c0_129, %c0_130], %98 {strides = array<i32>} : memref<1x20x16x16xf32, #tpu.memory_space<vmem>>, vector<1x1x16x16xf32>,
    %c0_131 = arith.constant 0 : index
    %c17 = arith.constant 17 : index
    %c0_132 = arith.constant 0 : index
    %c0_133 = arith.constant 0 : index
    %99 = vector.load %arg2[%c0_131, %c17, %c0_132, %c0_133] : memref<1x20x16x16xf32, #tpu.memory_space<vmem>>, vector<1x1x16x16xf32>
    %100 = vector.shape_cast %99 : vector<1x1x16x16xf32> to vector<16x16xf32>
    %c15_i32_134 = arith.constant 15 : i32
    %101 = tpu.dynamic_rotate %100 by %c15_i32_134 dim 0 : vector<16x16xf32>, i32 -> vector<16x16xf32>
    %c0_135 = arith.constant 0 : index
    %c17_136 = arith.constant 17 : index
    %c0_137 = arith.constant 0 : index
    %c0_138 = arith.constant 0 : index
    %102 = vector.load %arg3[%c0_135, %c17_136, %c0_137, %c0_138] : memref<1x20x16x16xf32, #tpu.memory_space<vmem>>, vector<1x1x16x16xf32>
    %103 = vector.shape_cast %102 : vector<1x1x16x16xf32> to vector<16x16xf32>
    %104 = vector.shape_cast %101 : vector<16x16xf32> to vector<1x1x16x16xf32>
    tpu.vector_store %arg3[%c0_135, %c17_136, %c0_137, %c0_138], %104 {strides = array<i32>} : memref<1x20x16x16xf32, #tpu.memory_space<vmem>>, vector<1x1x16x16xf32>,
    %c0_139 = arith.constant 0 : index
    %c18 = arith.constant 18 : index
    %c0_140 = arith.constant 0 : index
    %c0_141 = arith.constant 0 : index
    %105 = vector.load %arg2[%c0_139, %c18, %c0_140, %c0_141] : memref<1x20x16x16xf32, #tpu.memory_space<vmem>>, vector<1x1x16x16xf32>
    %106 = vector.shape_cast %105 : vector<1x1x16x16xf32> to vector<16x16xf32>
    %c1_i32_142 = arith.constant 1 : i32
    %107 = tpu.dynamic_rotate %106 by %c1_i32_142 dim 0 : vector<16x16xf32>, i32 -> vector<16x16xf32>
    %c0_143 = arith.constant 0 : index
    %c18_144 = arith.constant 18 : index
    %c0_145 = arith.constant 0 : index
    %c0_146 = arith.constant 0 : index
    %108 = vector.load %arg3[%c0_143, %c18_144, %c0_145, %c0_146] : memref<1x20x16x16xf32, #tpu.memory_space<vmem>>, vector<1x1x16x16xf32>
    %109 = vector.shape_cast %108 : vector<1x1x16x16xf32> to vector<16x16xf32>
    %110 = vector.shape_cast %107 : vector<16x16xf32> to vector<1x1x16x16xf32>
    tpu.vector_store %arg3[%c0_143, %c18_144, %c0_145, %c0_146], %110 {strides = array<i32>} : memref<1x20x16x16xf32, #tpu.memory_space<vmem>>, vector<1x1x16x16xf32>,
    %c0_147 = arith.constant 0 : index
    %c19 = arith.constant 19 : index
    %c0_148 = arith.constant 0 : index
    %c0_149 = arith.constant 0 : index
    %111 = vector.load %arg2[%c0_147, %c19, %c0_148, %c0_149] : memref<1x20x16x16xf32, #tpu.memory_space<vmem>>, vector<1x1x16x16xf32>
    %112 = vector.shape_cast %111 : vector<1x1x16x16xf32> to vector<16x16xf32>
    %c0_150 = arith.constant 0 : index
    %c19_151 = arith.constant 19 : index
    %c0_152 = arith.constant 0 : index
    %c0_153 = arith.constant 0 : index
    %113 = vector.load %arg3[%c0_150, %c19_151, %c0_152, %c0_153] : memref<1x20x16x16xf32, #tpu.memory_space<vmem>>, vector<1x1x16x16xf32>
    %114 = vector.shape_cast %113 : vector<1x1x16x16xf32> to vector<16x16xf32>
    %115 = vector.shape_cast %112 : vector<16x16xf32> to vector<1x1x16x16xf32>
    tpu.vector_store %arg3[%c0_150, %c19_151, %c0_152, %c0_153], %115 {strides = array<i32>} : memref<1x20x16x16xf32, #tpu.memory_space<vmem>>, vector<1x1x16x16xf32>,
    return
  }
  func.func @transform_0(%arg0: i32, %arg1: i32) -> (i32, i32, i32, i32) {
    %c0_i32 = arith.constant 0 : i32
    %c0_i32_0 = arith.constant 0 : i32
    %c0_i32_1 = arith.constant 0 : i32
    return %arg0, %arg1, %c0_i32, %c0_i32_0 : i32, i32, i32, i32
  }
  func.func @transform_1(%arg0: i32, %arg1: i32) -> (i32, i32, i32, i32) {
    %c0_i32 = arith.constant 0 : i32
    %c0_i32_0 = arith.constant 0 : i32
    %c0_i32_1 = arith.constant 0 : i32
    return %arg0, %arg1, %c0_i32, %c0_i32_0 : i32, i32, i32, i32
  }
}

</mosaic_0001>

<llo_original>
// kernel: tpu_custom_call.1
$region0: #{tpu_custom_call.1}
  #allocation0 [shape = 'u32[]', space=smem, size = 0x4, offset = 0x4, fixed_abs, tag = 'smem constant byte address 0x4 - core index']
  #allocation1 [shape = 'u32[144,128]{1,0:T(1,128)}', space=vmem, size = 0x12000, scoped, tag = 'internal scratch']
  %s0 = inlined_call_operand.vmem [shape: f32[2,20,16,16], index: 0, kind: input, shape index: {}]
  %s1 = inlined_call_operand.vmem [shape: f32[2,20,16,16], index: 1, kind: output, shape index: {}]
  %s2 = sld [smem:[#allocation0]]
  $region37: #{tpu_custom_call.1} parent=0
    _
  %s4 = ssub.s32 1, %s2
  %s5 = scalar_select 0, %s4, %s2
  loop: start=0, step=1, limit=4
  $region2: #{tpu_custom_call.1} parent=0 // loop_pre_header
    _
  $region3: #{tpu_custom_call.1} parent=0 // loop_header
    %s7 = sphi 0, %s11
    %p8 = scmp.ge.s32.totalorder %s7, 4
    %s14 = sphi 0, %s26
    %s15 = sphi 0, %s22
    %s16 = sphi 0, %s14
    %s17 = sphi 0, %s15
    %s18 = sphi 0, %s16
    %s19 = sphi 0, %s17
    %s31 = sphi 0, %s33
    %s34 = sphi 0, %s31
    %s35 = sphi 0, %s34
    %s51 = sphi 0, %s35
    %s59 = sphi 0, %s61
    %s62 = sphi 0, %s59
    %s63 = sphi 0, %s62
    %s79 = sphi 0, %s63
  $region4: #{tpu_custom_call.1} parent=0 // loop_header_branch
    %10 = sbr.rel (%p8) target = $region8
  $region5: #{tpu_custom_call.1} parent=0 // loop_body
    %s12 = ssub.s32 %s7, 1
    %s13 = ssub.s32 %s7, 2
    %s20 = sadd.s32 1, %s15
    %p21 = scmp.ge.s32.totalorder %s20, 1
    %s22 = scalar_select %p21, 0, %s20
    %s23 = sadd.s32 1, %s14
    %s24 = scalar_select %p21, %s23, %s14
    %p25 = scmp.ge.s32.totalorder %s24, 2
    %s26 = scalar_select %p25, 0, %s24
    %s27 = ssub.s32 %s14, %s26
    %s28 = ssub.s32 %s15, %s22
    %s29 = sor.u32 %s27, %s28
    %p30 = scmp.eq.s32.totalorder %s29, 0
    %s32 = sadd.s32 %s31, 1
    %s33 = scalar_select %p30, %s31, %s32
    %p36 = pneg %p30
    %p37 = scmp.eq.s32.totalorder %s7, 1
    %p38 = por %p36, %p37
    %p39 = scmp.ne.s32.totalorder %s31, %s34
    %p40 = scmp.eq.s32.totalorder %s7, 0
    %p41 = por %p39, %p40
    %p42 = scmp.ne.s32.totalorder %s31, %s34
    %p43 = scmp.eq.s32.totalorder %s12, 1
    %p44 = por %p42, %p43
    %p45 = scmp.ne.s32.totalorder %s34, %s35
    %p46 = scmp.eq.s32.totalorder %s12, 0
    %p47 = por %p45, %p46
    %p48 = scmp.ne.s32.totalorder %s34, %s35
    %p49 = scmp.eq.s32.totalorder %s13, 1
    %p50 = por %p48, %p49
    %p52 = scmp.ne.s32.totalorder %s35, %s51
    %p53 = scmp.eq.s32.totalorder %s13, 0
    %p54 = por %p52, %p53
    %s55 = ssub.s32 %s14, %s26
    %s56 = ssub.s32 %s15, %s22
    %s57 = sor.u32 %s55, %s56
    %p58 = scmp.eq.s32.totalorder %s57, 0
    %s60 = sadd.s32 %s59, 1
    %s61 = scalar_select %p58, %s59, %s60
    %p64 = pneg %p58
    %p65 = scmp.eq.s32.totalorder %s7, 1
    %p66 = por %p64, %p65
    %p67 = scmp.ne.s32.totalorder %s59, %s62
    %p68 = scmp.eq.s32.totalorder %s7, 0
    %p69 = por %p67, %p68
    %p70 = scmp.ne.s32.totalorder %s59, %s62
    %p71 = scmp.eq.s32.totalorder %s12, 1
    %p72 = por %p70, %p71
    %p73 = scmp.ne.s32.totalorder %s62, %s63
    %p74 = scmp.eq.s32.totalorder %s12, 0
    %p75 = por %p73, %p74
    %p76 = scmp.ne.s32.totalorder %s62, %s63
    %p77 = scmp.eq.s32.totalorder %s13, 1
    %p78 = por %p76, %p77
    %p80 = scmp.ne.s32.totalorder %s63, %s79
    %p81 = scmp.eq.s32.totalorder %s13, 0
    %p82 = por %p80, %p81
    %p83 = scmp.le.s32.totalorder 1, %s7
    %p84 = scmp.lt.s32.totalorder %s7, 3
    %p85 = pnand %p83, %p84
    %p86 = pneg %p85
    // Predicated region
    $region9: #{tpu_custom_call.1} parent=5 // pred_check
      _
    $region10: #{tpu_custom_call.1} parent=5 // pred_check_branch
      %88 = sbr.rel (%p85) target = $region12
    $region11: #{tpu_custom_call.1} parent=5 // pred_region
      %s89 = ssub.s32 %s7, 1
    $region12: #{tpu_custom_call.1} parent=5 // pred_fallthru
      _
    %p90 = scmp.lt.s32.totalorder %s7, 2
    // Predicated region
    $region13: #{tpu_custom_call.1} parent=5 // pred_check
      %p91 = pneg %p90
    $region14: #{tpu_custom_call.1} parent=5 // pred_check_branch
      %93 = sbr.rel (%p91) target = $region16
    $region15: #{tpu_custom_call.1} parent=5 // pred_region
      // Predicated region
      $region17: #{tpu_custom_call.1} parent=15 // pred_check
        %p94 = pneg %p41
      $region18: #{tpu_custom_call.1} parent=15 // pred_check_branch
        %96 = sbr.rel (%p94) target = $region20
      $region19: #{tpu_custom_call.1} parent=15 // pred_region
        %s97 = smul.u32 20, %s15
        %p98 = scmp.lt.s32.totalorder %s14, 1
        %s99 = scalar_select %p98, %s14, 1
        %p100 = scmp.lt.s32.totalorder %s97, 19
        %s101 = scalar_select %p100, %s97, 19
        %s102 = smul.addr %s101, 2
        %s103 = smul.addr %s99, 40
        %s104 = sadd.s32 %s102, %s103
        %s105 = smul.addr %s104, 8
        %s106 = scalar_lea.vmem %s0, %s105
        %s107 = smul.u32 20, %s15
      $region20: #{tpu_custom_call.1} parent=15 // pred_fallthru
        _
    $region16: #{tpu_custom_call.1} parent=5 // pred_fallthru
      _
    %p108 = scmp.le.s32.totalorder 1, %s7
    %p109 = scmp.lt.s32.totalorder %s7, 3
    %p110 = pnand %p108, %p109
    %p111 = pneg %p110
    // Predicated region
    $region21: #{tpu_custom_call.1} parent=5 // pred_check
      _
    $region22: #{tpu_custom_call.1} parent=5 // pred_check_branch
      %113 = sbr.rel (%p110) target = $region24
    $region23: #{tpu_custom_call.1} parent=5 // pred_region
      %s114 = ssub.s32 %s7, 1
      %s115 = smul.u32 20, %s17
      %p116 = scmp.lt.s32.totalorder %s16, 1
      %s117 = scalar_select %p116, %s16, 1
      %p118 = scmp.lt.s32.totalorder %s115, 19
      %s119 = scalar_select %p118, %s115, 19
      %s120 = smul.addr %s119, 2
      %s121 = smul.addr %s117, 40
      %s122 = sadd.s32 %s120, %s121
      %s123 = smul.addr %s122, 8
      %s124 = scalar_lea.vmem %s0, %s123
      %p125 = pneg %p47
      %p126 = pneg %p44
      %p127 = pneg %p75
      %p128 = pneg %p72
      %s129 = smul.u32 20, %s17
      %p130 = scmp.lt.s32.totalorder %s16, 1
      %s131 = scalar_select %p130, %s16, 1
      %p132 = scmp.lt.s32.totalorder %s129, 19
      %s133 = scalar_select %p132, %s129, 19
      %s134 = smul.addr %s133, 2
      %s135 = smul.addr %s131, 40
      %s136 = sadd.s32 %s134, %s135
      %s137 = smul.addr %s136, 8
      %s138 = scalar_lea.vmem %s1, %s137
      %s139 = smul.u32 20, %s17
      %p140 = scmp.lt.s32.totalorder %s16, 1
      %s141 = scalar_select %p140, %s16, 1
      %p142 = scmp.lt.s32.totalorder %s139, 19
      %s143 = scalar_select %p142, %s139, 19
      %s144 = smul.addr %s143, 2
      %s145 = smul.addr %s141, 40
      %s146 = sadd.s32 %s144, %s145
      %s147 = smul.addr %s146, 8
      %s148 = scalar_lea.vmem %s0, %s147
      %s149 = smul.u32 20, %s17
      %s150 = smul.u32 20, %s17
      %p151 = scmp.lt.s32.totalorder %s16, 1
      %s152 = scalar_select %p151, %s16, 1
      %p153 = scmp.lt.s32.totalorder %s150, 19
      %s154 = scalar_select %p153, %s150, 19
      %s155 = smul.addr %s154, 2
      %s156 = smul.addr %s152, 40
      %s157 = sadd.s32 %s155, %s156
      %s158 = smul.addr %s157, 8
      %s159 = scalar_lea.vmem %s1, %s158
      %s160 = smul.u32 20, %s17
      %v161 = vld [vmem:[%s148] sm:$0xff]
      %v162 = vld [vmem:[%s148 + $0x8] sm:$0xff]
      %vm163 = vcmask 1047680
      %164 = vrot.lane.b32.xlu0 %v161, 16
      %v165 = vpop.permute.xlu0 %164
      %v166 = vsel %vm163, %v165, %v161
      %167 = vrot.lane.b32.xlu0 %v162, 16
      %v168 = vpop.permute.xlu0 %167
      %v169 = vsel %vm163, %v168, %v162
      %170 = vrot.lane.b32.xlu0 %v166, 16
      %v171 = vpop.permute.xlu0 %170
      %172 = vrot.lane.b32.xlu0 %v169, 16
      %v173 = vpop.permute.xlu0 %172
      %v174 = vsel %vm163, %v171, %v161
      %v175 = vsel %vm163, %v173, %v162
      %178 = vrot.lane.b32.xlu0 %v174, 127
      %v179 = vpop.permute.xlu0 %178
      %180 = vrot.lane.b32.xlu0 %v175, 127
      %v181 = vpop.permute.xlu0 %180
      %vm184 = vcmask 130048
      %185 = vst.msk [vmem:[%s159] sm:$0xff] %vm184, %v179
      %186 = vst.msk [vmem:[%s159 + $0x8] sm:$0xff] %vm184, %v181
      %s187 = scalar_lea.vmem %s148, 16
      %v188 = vld [vmem:[%s187] sm:$0xff]
      %v189 = vld [vmem:[%s187 + $0x8] sm:$0xff]
      %190 = vrot.lane.b32.xlu0 %v188, 16
      %v191 = vpop.permute.xlu0 %190
      %v192 = vsel %vm163, %v191, %v188
      %193 = vrot.lane.b32.xlu0 %v189, 16
      %v194 = vpop.permute.xlu0 %193
      %v195 = vsel %vm163, %v194, %v189
      %196 = vrot.lane.b32.xlu0 %v192, 16
      %v197 = vpop.permute.xlu0 %196
      %198 = vrot.lane.b32.xlu0 %v195, 16
      %v199 = vpop.permute.xlu0 %198
      %v200 = vsel %vm163, %v197, %v188
      %v201 = vsel %vm163, %v199, %v189
      %204 = vrot.lane.b32.xlu0 %v200, 113
      %v205 = vpop.permute.xlu0 %204
      %206 = vrot.lane.b32.xlu0 %v201, 113
      %v207 = vpop.permute.xlu0 %206
      %s210 = scalar_lea.vmem %s159, 16
      %211 = vst.msk [vmem:[%s210] sm:$0xff] %vm184, %v205
      %212 = vst.msk [vmem:[%s210 + $0x8] sm:$0xff] %vm184, %v207
      %s213 = scalar_lea.vmem %s148, 32
      %v214 = vld [vmem:[%s213] sm:$0xff]
      %v215 = vld [vmem:[%s213 + $0x8] sm:$0xff]
      %v216 = vrot.slane %v214, 1
      %v217 = vrot.slane %v215, 1
      %v218 = vlaneseq
      %v219 = vshrl.u32 %v218, 7
      %vm220 = vcmp.lt.s32.totalorder %v219, 7
      %v221 = vsel %vm220, %v216, %v217
      %v222 = vsel %vm220, %v217, %v216
      %s223 = scalar_lea.vmem %s159, 32
      %224 = vst.msk [vmem:[%s223] sm:$0xff] %vm184, %v221
      %225 = vst.msk [vmem:[%s223 + $0x8] sm:$0xff] %vm184, %v222
      %s226 = scalar_lea.vmem %s148, 48
      %v227 = vld [vmem:[%s226] sm:$0xff]
      %v228 = vld [vmem:[%s226 + $0x8] sm:$0xff]
      %v229 = vrot.slane %v227, 7
      %v230 = vrot.slane %v228, 7
      %vm231 = vcmp.lt.s32.totalorder %v219, 1
      %v232 = vsel %vm231, %v229, %v230
      %v233 = vsel %vm231, %v230, %v229
      %s234 = scalar_lea.vmem %s159, 48
      %235 = vst.msk [vmem:[%s234] sm:$0xff] %vm184, %v233
      %236 = vst.msk [vmem:[%s234 + $0x8] sm:$0xff] %vm184, %v232
      %s237 = scalar_lea.vmem %s148, 64
      %v238 = vld [vmem:[%s237] sm:$0xff]
      %v239 = vld [vmem:[%s237 + $0x8] sm:$0xff]
      %s240 = scalar_lea.vmem %s159, 64
      %241 = vst.msk [vmem:[%s240] sm:$0xff] %vm184, %v238
      %242 = vst.msk [vmem:[%s240 + $0x8] sm:$0xff] %vm184, %v239
      %s243 = scalar_lea.vmem %s148, 80
      %v244 = vld [vmem:[%s243] sm:$0xff]
      %v245 = vld [vmem:[%s243 + $0x8] sm:$0xff]
      %246 = vrot.lane.b32.xlu0 %v244, 16
      %v247 = vpop.permute.xlu0 %246
      %v248 = vsel %vm163, %v247, %v244
      %249 = vrot.lane.b32.xlu0 %v245, 16
      %v250 = vpop.permute.xlu0 %249
      %v251 = vsel %vm163, %v250, %v245
      %252 = vrot.lane.b32.xlu0 %v248, 16
      %v253 = vpop.permute.xlu0 %252
      %254 = vrot.lane.b32.xlu0 %v251, 16
      %v255 = vpop.permute.xlu0 %254
      %v256 = vsel %vm163, %v253, %v244
      %v257 = vsel %vm163, %v255, %v245
      %260 = vrot.lane.b32.xlu0 %v256, 127
      %v261 = vpop.permute.xlu0 %260
      %262 = vrot.lane.b32.xlu0 %v257, 127
      %v263 = vpop.permute.xlu0 %262
      %s266 = scalar_lea.vmem %s159, 80
      %267 = vst.msk [vmem:[%s266] sm:$0xff] %vm184, %v261
      %268 = vst.msk [vmem:[%s266 + $0x8] sm:$0xff] %vm184, %v263
      %s269 = scalar_lea.vmem %s148, 96
      %v270 = vld [vmem:[%s269] sm:$0xff]
      %v271 = vld [vmem:[%s269 + $0x8] sm:$0xff]
      %272 = vrot.lane.b32.xlu0 %v270, 16
      %v273 = vpop.permute.xlu0 %272
      %v274 = vsel %vm163, %v273, %v270
      %275 = vrot.lane.b32.xlu0 %v271, 16
      %v276 = vpop.permute.xlu0 %275
      %v277 = vsel %vm163, %v276, %v271
      %278 = vrot.lane.b32.xlu0 %v274, 16
      %v279 = vpop.permute.xlu0 %278
      %280 = vrot.lane.b32.xlu0 %v277, 16
      %v281 = vpop.permute.xlu0 %280
      %v282 = vsel %vm163, %v279, %v270
      %v283 = vsel %vm163, %v281, %v271
      %286 = vrot.lane.b32.xlu0 %v282, 113
      %v287 = vpop.permute.xlu0 %286
      %288 = vrot.lane.b32.xlu0 %v283, 113
      %v289 = vpop.permute.xlu0 %288
      %s292 = scalar_lea.vmem %s159, 96
      %293 = vst.msk [vmem:[%s292] sm:$0xff] %vm184, %v287
      %294 = vst.msk [vmem:[%s292 + $0x8] sm:$0xff] %vm184, %v289
      %s295 = scalar_lea.vmem %s148, 112
      %v296 = vld [vmem:[%s295] sm:$0xff]
      %v297 = vld [vmem:[%s295 + $0x8] sm:$0xff]
      %v298 = vrot.slane %v296, 1
      %v299 = vrot.slane %v297, 1
      %v300 = vsel %vm220, %v298, %v299
      %v301 = vsel %vm220, %v299, %v298
      %s302 = scalar_lea.vmem %s159, 112
      %303 = vst.msk [vmem:[%s302] sm:$0xff] %vm184, %v300
      %304 = vst.msk [vmem:[%s302 + $0x8] sm:$0xff] %vm184, %v301
      %s305 = scalar_lea.vmem %s148, 128
      %v306 = vld [vmem:[%s305] sm:$0xff]
      %v307 = vld [vmem:[%s305 + $0x8] sm:$0xff]
      %v308 = vrot.slane %v306, 7
      %v309 = vrot.slane %v307, 7
      %v310 = vsel %vm231, %v308, %v309
      %v311 = vsel %vm231, %v309, %v308
      %s312 = scalar_lea.vmem %s159, 128
      %313 = vst.msk [vmem:[%s312] sm:$0xff] %vm184, %v311
      %314 = vst.msk [vmem:[%s312 + $0x8] sm:$0xff] %vm184, %v310
      %s315 = scalar_lea.vmem %s148, 144
      %v316 = vld [vmem:[%s315] sm:$0xff]
      %v317 = vld [vmem:[%s315 + $0x8] sm:$0xff]
      %s318 = scalar_lea.vmem %s159, 144
      %319 = vst.msk [vmem:[%s318] sm:$0xff] %vm184, %v316
      %320 = vst.msk [vmem:[%s318 + $0x8] sm:$0xff] %vm184, %v317
      %s321 = scalar_lea.vmem %s148, 160
      %v322 = vld [vmem:[%s321] sm:$0xff]
      %v323 = vld [vmem:[%s321 + $0x8] sm:$0xff]
      %324 = vrot.lane.b32.xlu0 %v322, 16
      %v325 = vpop.permute.xlu0 %324
      %v326 = vsel %vm163, %v325, %v322
      %327 = vrot.lane.b32.xlu0 %v323, 16
      %v328 = vpop.permute.xlu0 %327
      %v329 = vsel %vm163, %v328, %v323
      %330 = vrot.lane.b32.xlu0 %v326, 16
      %v331 = vpop.permute.xlu0 %330
      %332 = vrot.lane.b32.xlu0 %v329, 16
      %v333 = vpop.permute.xlu0 %332
      %v334 = vsel %vm163, %v331, %v322
      %v335 = vsel %vm163, %v333, %v323
      %338 = vrot.lane.b32.xlu0 %v334, 127
      %v339 = vpop.permute.xlu0 %338
      %340 = vrot.lane.b32.xlu0 %v335, 127
      %v341 = vpop.permute.xlu0 %340
      %s344 = scalar_lea.vmem %s159, 160
      %345 = vst.msk [vmem:[%s344] sm:$0xff] %vm184, %v339
      %346 = vst.msk [vmem:[%s344 + $0x8] sm:$0xff] %vm184, %v341
      %s347 = scalar_lea.vmem %s148, 176
      %v348 = vld [vmem:[%s347] sm:$0xff]
      %v349 = vld [vmem:[%s347 + $0x8] sm:$0xff]
      %350 = vrot.lane.b32.xlu0 %v348, 16
      %v351 = vpop.permute.xlu0 %350
      %v352 = vsel %vm163, %v351, %v348
      %353 = vrot.lane.b32.xlu0 %v349, 16
      %v354 = vpop.permute.xlu0 %353
      %v355 = vsel %vm163, %v354, %v349
      %356 = vrot.lane.b32.xlu0 %v352, 16
      %v357 = vpop.permute.xlu0 %356
      %358 = vrot.lane.b32.xlu0 %v355, 16
      %v359 = vpop.permute.xlu0 %358
      %v360 = vsel %vm163, %v357, %v348
      %v361 = vsel %vm163, %v359, %v349
      %364 = vrot.lane.b32.xlu0 %v360, 113
      %v365 = vpop.permute.xlu0 %364
      %366 = vrot.lane.b32.xlu0 %v361, 113
      %v367 = vpop.permute.xlu0 %366
      %s370 = scalar_lea.vmem %s159, 176
      %371 = vst.msk [vmem:[%s370] sm:$0xff] %vm184, %v365
      %372 = vst.msk [vmem:[%s370 + $0x8] sm:$0xff] %vm184, %v367
      %s373 = scalar_lea.vmem %s148, 192
      %v374 = vld [vmem:[%s373] sm:$0xff]
      %v375 = vld [vmem:[%s373 + $0x8] sm:$0xff]
      %v376 = vrot.slane %v374, 1
      %v377 = vrot.slane %v375, 1
      %v378 = vsel %vm220, %v376, %v377
      %v379 = vsel %vm220, %v377, %v376
      %s380 = scalar_lea.vmem %s159, 192
      %381 = vst.msk [vmem:[%s380] sm:$0xff] %vm184, %v378
      %382 = vst.msk [vmem:[%s380 + $0x8] sm:$0xff] %vm184, %v379
      %s383 = scalar_lea.vmem %s148, 208
      %v384 = vld [vmem:[%s383] sm:$0xff]
      %v385 = vld [vmem:[%s383 + $0x8] sm:$0xff]
      %v386 = vrot.slane %v384, 7
      %v387 = vrot.slane %v385, 7
      %v388 = vsel %vm231, %v386, %v387
      %v389 = vsel %vm231, %v387, %v386
      %s390 = scalar_lea.vmem %s159, 208
      %391 = vst.msk [vmem:[%s390] sm:$0xff] %vm184, %v389
      %392 = vst.msk [vmem:[%s390 + $0x8] sm:$0xff] %vm184, %v388
      %s393 = scalar_lea.vmem %s148, 224
      %v394 = vld [vmem:[%s393] sm:$0xff]
      %v395 = vld [vmem:[%s393 + $0x8] sm:$0xff]
      %s396 = scalar_lea.vmem %s159, 224
      %397 = vst.msk [vmem:[%s396] sm:$0xff] %vm184, %v394
      %398 = vst.msk [vmem:[%s396 + $0x8] sm:$0xff] %vm184, %v395
      %s399 = scalar_lea.vmem %s148, 240
      %v400 = vld [vmem:[%s399] sm:$0xff]
      %v401 = vld [vmem:[%s399 + $0x8] sm:$0xff]
      %402 = vrot.lane.b32.xlu0 %v400, 16
      %v403 = vpop.permute.xlu0 %402
      %v404 = vsel %vm163, %v403, %v400
      %405 = vrot.lane.b32.xlu0 %v401, 16
      %v406 = vpop.permute.xlu0 %405
      %v407 = vsel %vm163, %v406, %v401
      %408 = vrot.lane.b32.xlu0 %v404, 16
      %v409 = vpop.permute.xlu0 %408
      %410 = vrot.lane.b32.xlu0 %v407, 16
      %v411 = vpop.permute.xlu0 %410
      %v412 = vsel %vm163, %v409, %v400
      %v413 = vsel %vm163, %v411, %v401
      %416 = vrot.lane.b32.xlu0 %v412, 127
      %v417 = vpop.permute.xlu0 %416
      %418 = vrot.lane.b32.xlu0 %v413, 127
      %v419 = vpop.permute.xlu0 %418
      %s422 = scalar_lea.vmem %s159, 240
      %423 = vst.msk [vmem:[%s422] sm:$0xff] %vm184, %v417
      %424 = vst.msk [vmem:[%s422 + $0x8] sm:$0xff] %vm184, %v419
      %s425 = scalar_lea.vmem %s148, 256
      %v426 = vld [vmem:[%s425] sm:$0xff]
      %v427 = vld [vmem:[%s425 + $0x8] sm:$0xff]
      %428 = vrot.lane.b32.xlu0 %v426, 16
      %v429 = vpop.permute.xlu0 %428
      %v430 = vsel %vm163, %v429, %v426
      %431 = vrot.lane.b32.xlu0 %v427, 16
      %v432 = vpop.permute.xlu0 %431
      %v433 = vsel %vm163, %v432, %v427
      %434 = vrot.lane.b32.xlu0 %v430, 16
      %v435 = vpop.permute.xlu0 %434
      %436 = vrot.lane.b32.xlu0 %v433, 16
      %v437 = vpop.permute.xlu0 %436
      %v438 = vsel %vm163, %v435, %v426
      %v439 = vsel %vm163, %v437, %v427
      %442 = vrot.lane.b32.xlu0 %v438, 113
      %v443 = vpop.permute.xlu0 %442
      %444 = vrot.lane.b32.xlu0 %v439, 113
      %v445 = vpop.permute.xlu0 %444
      %s448 = scalar_lea.vmem %s159, 256
      %449 = vst.msk [vmem:[%s448] sm:$0xff] %vm184, %v443
      %450 = vst.msk [vmem:[%s448 + $0x8] sm:$0xff] %vm184, %v445
      %s451 = scalar_lea.vmem %s148, 272
      %v452 = vld [vmem:[%s451] sm:$0xff]
      %v453 = vld [vmem:[%s451 + $0x8] sm:$0xff]
      %v454 = vrot.slane %v452, 1
      %v455 = vrot.slane %v453, 1
      %v456 = vsel %vm220, %v454, %v455
      %v457 = vsel %vm220, %v455, %v454
      %s458 = scalar_lea.vmem %s159, 272
      %459 = vst.msk [vmem:[%s458] sm:$0xff] %vm184, %v456
      %460 = vst.msk [vmem:[%s458 + $0x8] sm:$0xff] %vm184, %v457
      %s461 = scalar_lea.vmem %s148, 288
      %v462 = vld [vmem:[%s461] sm:$0xff]
      %v463 = vld [vmem:[%s461 + $0x8] sm:$0xff]
      %v464 = vrot.slane %v462, 7
      %v465 = vrot.slane %v463, 7
      %v466 = vsel %vm231, %v464, %v465
      %v467 = vsel %vm231, %v465, %v464
      %s468 = scalar_lea.vmem %s159, 288
      %469 = vst.msk [vmem:[%s468] sm:$0xff] %vm184, %v467
      %470 = vst.msk [vmem:[%s468 + $0x8] sm:$0xff] %vm184, %v466
      %s471 = scalar_lea.vmem %s148, 304
      %v472 = vld [vmem:[%s471] sm:$0xff]
      %v473 = vld [vmem:[%s471 + $0x8] sm:$0xff]
      %s474 = scalar_lea.vmem %s159, 304
      %475 = vst.msk [vmem:[%s474] sm:$0xff] %vm184, %v472
      %476 = vst.msk [vmem:[%s474 + $0x8] sm:$0xff] %vm184, %v473
      %s477 = smul.u32 20, %s17
      %p478 = scmp.lt.s32.totalorder %s16, 1
      %s479 = scalar_select %p478, %s16, 1
      %p480 = scmp.lt.s32.totalorder %s477, 19
      %s481 = scalar_select %p480, %s477, 19
      %s482 = smul.addr %s481, 2
      %s483 = smul.addr %s479, 40
      %s484 = sadd.s32 %s482, %s483
      %s485 = smul.addr %s484, 8
      %s486 = scalar_lea.vmem %s1, %s485
      // Predicated region
      $region25: #{tpu_custom_call.1} parent=23 // pred_check
        %p487 = pneg %p72
      $region26: #{tpu_custom_call.1} parent=23 // pred_check_branch
        %489 = sbr.rel (%p487) target = $region28
      $region27: #{tpu_custom_call.1} parent=23 // pred_region
        %s490 = smul.u32 20, %s17
      $region28: #{tpu_custom_call.1} parent=23 // pred_fallthru
        _
    $region24: #{tpu_custom_call.1} parent=5 // pred_fallthru
      _
    %p491 = scmp.le.s32.totalorder 2, %s7
    // Predicated region
    $region29: #{tpu_custom_call.1} parent=5 // pred_check
      %p492 = pneg %p491
    $region30: #{tpu_custom_call.1} parent=5 // pred_check_branch
      %494 = sbr.rel (%p492) target = $region32
    $region31: #{tpu_custom_call.1} parent=5 // pred_region
      %s495 = ssub.s32 %s7, 2
      // Predicated region
      $region33: #{tpu_custom_call.1} parent=31 // pred_check
        %p496 = pneg %p78
      $region34: #{tpu_custom_call.1} parent=31 // pred_check_branch
        %498 = sbr.rel (%p496) target = $region36
      $region35: #{tpu_custom_call.1} parent=31 // pred_region
        %s499 = smul.u32 20, %s19
        %p500 = scmp.lt.s32.totalorder %s18, 1
        %s501 = scalar_select %p500, %s18, 1
        %p502 = scmp.lt.s32.totalorder %s499, 19
        %s503 = scalar_select %p502, %s499, 19
        %s504 = smul.addr %s503, 2
        %s505 = smul.addr %s501, 40
        %s506 = sadd.s32 %s504, %s505
        %s507 = smul.addr %s506, 8
        %s508 = scalar_lea.vmem %s1, %s507
      $region36: #{tpu_custom_call.1} parent=31 // pred_fallthru
        _
    $region32: #{tpu_custom_call.1} parent=5 // pred_fallthru
      _
  $region6: #{tpu_custom_call.1} parent=0 // loop_footer
    %s11 = sadd.s32 1, %s7
  $region7: #{tpu_custom_call.1} parent=0 // loop_footer_branch
    %6 = sbr.rel target = $region3
  $region8: #{tpu_custom_call.1} parent=0 // loop_exit
    _

</llo_original>
